<compile_context>
chip_gen: v7x
topology: tpu7x:2x2x1
jax: 0.10.0
libtpu: 0.0.40
codegen_flags: <defaults>
</compile_context>

<pallas_src>
import jax
import jax.numpy as jnp
from jax.experimental import pallas as pl
from jax.experimental.pallas import tpu as pltpu

HIDDEN1, HIDDEN2, HIDDEN3, OUT = 64, 64, 32, 1


def _mlp_kernel(x_ref, w1_ref, w2_ref, w3_ref, small_ref, o_ref):
    """One (TB, input_dim) batch tile through the whole MLP.

    small_ref packs, row-wise: b1 (64), b2 (64), b3 (32), b4 (1), w4^T (32).
    """
    x = x_ref[...]

    b1 = small_ref[0:1, :]                 # (1, 64)
    b2 = small_ref[1:2, :]                 # (1, 64)
    b3 = small_ref[2:3, 0:HIDDEN3]         # (1, 32)
    b4 = small_ref[3:4, 0:1]               # (1, 1)
    w4_row = small_ref[4:5, 0:HIDDEN3]     # (1, 32) == w4.T

    h = jnp.dot(x, w1_ref[...], preferred_element_type=jnp.float32) + b1
    h = jnp.maximum(h, 0.0)

    h = jnp.dot(h, w2_ref[...], preferred_element_type=jnp.float32) + b2
    h = jnp.maximum(h, 0.0)

    h = jnp.dot(h, w3_ref[...], preferred_element_type=jnp.float32) + b3
    h = jnp.maximum(h, 0.0)

    # Final layer (out width 1): VPU multiply + lane reduce instead of an N=1
    # MXU matmul (<1% MXU column utilization + MRF pop latency on the dep chain).
    out = jnp.sum(h * w4_row, axis=-1, keepdims=True) + b4
    o_ref[...] = out.astype(o_ref.dtype)


def _pack_small_params(params):
    """Pack biases + w4^T into a single (8, 64) f32 buffer (one DMA)."""
    small = jnp.zeros((8, 64), jnp.float32)
    small = small.at[0, :HIDDEN1].set(params["b1"].reshape(HIDDEN1))
    small = small.at[1, :HIDDEN2].set(params["b2"].reshape(HIDDEN2))
    small = small.at[2, :HIDDEN3].set(params["b3"].reshape(HIDDEN3))
    small = small.at[3, 0].set(params["b4"].reshape(()))
    small = small.at[4, :HIDDEN3].set(params["w4"].reshape(HIDDEN3))
    return small


def regression_model_forward(x, params, *, batch_tile=512):
    """Run the fused MLP Pallas kernel.

    x: (B, input_dim) float32
    params: dict with w1..w4 of shape (in, out) and b1..b4 of shape (1, out)
    returns: (B, 1) float32
    """
    B, D = x.shape

    # Tile size: 512 keeps the (TB,64) f32 intermediates within ~32 vregs; for
    # small batches use the (8-aligned) batch itself so no work is wasted.
    if B >= batch_tile:
        tb = batch_tile
    else:
        tb = max(8, ((B + 7) // 8) * 8)
    bp = pl.cdiv(B, tb) * tb
    if bp != B:
        x = jnp.pad(x, ((0, bp - B), (0, 0)))

    w1, w2, w3 = params["w1"], params["w2"], params["w3"]
    small = _pack_small_params(params)

    flops = 2 * B * (D * HIDDEN1 + HIDDEN1 * HIDDEN2 + HIDDEN2 * HIDDEN3 + HIDDEN3 * OUT)
    bytes_accessed = 4 * (bp * D + bp * OUT + w1.size + w2.size + w3.size + small.size)

    out = pl.pallas_call(
        _mlp_kernel,
        out_shape=jax.ShapeDtypeStruct((bp, OUT), jnp.float32),
        grid=(bp // tb,),
        in_specs=[
            pl.BlockSpec((tb, D), lambda i: (i, 0)),       # x: streamed per tile
            pl.BlockSpec(w1.shape, lambda i: (0, 0)),      # weights: VMEM-resident
            pl.BlockSpec(w2.shape, lambda i: (0, 0)),
            pl.BlockSpec(w3.shape, lambda i: (0, 0)),
            pl.BlockSpec(small.shape, lambda i: (0, 0)),   # packed biases + w4^T
        ],
        out_specs=pl.BlockSpec((tb, OUT), lambda i: (i, 0)),
        compiler_params=pltpu.CompilerParams(
            dimension_semantics=("parallel",)),
        cost_estimate=pl.CostEstimate(
            flops=flops, transcendentals=0, bytes_accessed=bytes_accessed),
    )(x, w1, w2, w3, small)

    return out[:B]


def init_params(key, input_dim):
    """Deterministic init mimicking nn.Linear's U(-1/sqrt(fan_in), +1/sqrt(fan_in))."""
    dims = [(input_dim, HIDDEN1), (HIDDEN1, HIDDEN2), (HIDDEN2, HIDDEN3), (HIDDEN3, OUT)]
    params = {}
    for i, (fan_in, fan_out) in enumerate(dims, start=1):
        key, kw, kb = jax.random.split(key, 3)
        bound = 1.0 / jnp.sqrt(jnp.float32(fan_in))
        params[f"w{i}"] = jax.random.uniform(
            kw, (fan_in, fan_out), jnp.float32, minval=-bound, maxval=bound)
        params[f"b{i}"] = jax.random.uniform(
            kb, (1, fan_out), jnp.float32, minval=-bound, maxval=bound)
    return params


def _reference_forward(x, params):
    dot = lambda a, b: jnp.dot(a, b, precision=jax.lax.Precision.HIGHEST)
    h = jnp.maximum(dot(x, params["w1"]) + params["b1"], 0.0)
    h = jnp.maximum(dot(h, params["w2"]) + params["b2"], 0.0)
    h = jnp.maximum(dot(h, params["w3"]) + params["b3"], 0.0)
    return dot(h, params["w4"]) + params["b4"]


if __name__ == "__main__":
    key = jax.random.PRNGKey(0)
    k_params, k_x1, k_x2 = jax.random.split(key, 3)

    input_dim = 16
    params = init_params(k_params, input_dim)

    # Small case (single tile, block == full array extent).
    x_small = jax.random.normal(k_x1, (8, input_dim), dtype=jnp.float32)
    y_small = jax.block_until_ready(regression_model_forward(x_small, params))
    assert y_small.shape == (8, 1)
    assert jnp.allclose(y_small, _reference_forward(x_small, params), atol=1e-5, rtol=1e-5)

    # Larger case exercising the batch grid + last-tile padding (TB=512, 2 steps).
    x_big = jax.random.normal(k_x2, (600, input_dim), dtype=jnp.float32)
    y_big = jax.block_until_ready(regression_model_forward(x_big, params))
    assert y_big.shape == (600, 1)
    assert jnp.allclose(y_big, _reference_forward(x_big, params), atol=1e-4, rtol=1e-4)

    print("KERNEL_OK")
</pallas_src>

<mosaic_0001>
module attributes {stable_mosaic.version = 11 : i64} {
  func.func @_mlp_kernel(%arg0: i32, %arg1: memref<8x16xf32, #tpu.memory_space<vmem>>, %arg2: memref<16x64xf32, #tpu.memory_space<vmem>>, %arg3: memref<64x64xf32, #tpu.memory_space<vmem>>, %arg4: memref<64x32xf32, #tpu.memory_space<vmem>>, %arg5: memref<8x64xf32, #tpu.memory_space<vmem>>, %arg6: memref<8x1xf32, #tpu.memory_space<vmem>>) attributes {dimension_semantics = [#tpu.dimension_semantics<parallel>], iteration_bounds = array<i64: 1>, scalar_prefetch = 0 : i64, scratch_operands = 0 : i64, tpu.core_type = #tpu.core_type<tc>, window_params = [{transform_indices = @transform_0, window_bounds = array<i64: 8, 16>}, {pipeline_mode = #tpu.pipeline_mode<synchronous>, transform_indices = @transform_1, window_bounds = array<i64: 16, 64>}, {pipeline_mode = #tpu.pipeline_mode<synchronous>, transform_indices = @transform_2, window_bounds = array<i64: 64, 64>}, {pipeline_mode = #tpu.pipeline_mode<synchronous>, transform_indices = @transform_3, window_bounds = array<i64: 64, 32>}, {pipeline_mode = #tpu.pipeline_mode<synchronous>, transform_indices = @transform_4, window_bounds = array<i64: 8, 64>}, {transform_indices = @transform_5, window_bounds = array<i64: 8, 1>}]} {
    %c0 = arith.constant 0 : index
    %c0_0 = arith.constant 0 : index
    %0 = vector.load %arg1[%c0, %c0_0] : memref<8x16xf32, #tpu.memory_space<vmem>>, vector<8x16xf32>
    %c0_1 = arith.constant 0 : index
    %c0_2 = arith.constant 0 : index
    %1 = vector.load %arg5[%c0_1, %c0_2] : memref<8x64xf32, #tpu.memory_space<vmem>>, vector<1x64xf32>
    %c1 = arith.constant 1 : index
    %c0_3 = arith.constant 0 : index
    %2 = vector.load %arg5[%c1, %c0_3] : memref<8x64xf32, #tpu.memory_space<vmem>>, vector<1x64xf32>
    %c2 = arith.constant 2 : index
    %c0_4 = arith.constant 0 : index
    %3 = vector.load %arg5[%c2, %c0_4] : memref<8x64xf32, #tpu.memory_space<vmem>>, vector<1x32xf32>
    %c3 = arith.constant 3 : index
    %c0_5 = arith.constant 0 : index
    %4 = vector.load %arg5[%c3, %c0_5] : memref<8x64xf32, #tpu.memory_space<vmem>>, vector<1x1xf32>
    %c4 = arith.constant 4 : index
    %c0_6 = arith.constant 0 : index
    %5 = vector.load %arg5[%c4, %c0_6] : memref<8x64xf32, #tpu.memory_space<vmem>>, vector<1x32xf32>
    %c0_7 = arith.constant 0 : index
    %c0_8 = arith.constant 0 : index
    %6 = vector.load %arg2[%c0_7, %c0_8] : memref<16x64xf32, #tpu.memory_space<vmem>>, vector<16x64xf32>
    %cst = arith.constant dense<0.000000e+00> : vector<8x64xf32>
    %7 = tpu.matmul %0, %6, %cst {dimension_numbers = #tpu.dot_dimension_numbers<[1], [0], [0], [1], [0, 0, 1, 1], [], []>} : vector<8x16xf32>, vector<16x64xf32>, vector<8x64xf32> -> vector<8x64xf32>
    %8 = vector.broadcast %1 : vector<1x64xf32> to vector<8x64xf32>
    %9 = arith.addf %7, %8 : vector<8x64xf32>
    %cst_9 = arith.constant 0.000000e+00 : f32
    %10 = vector.broadcast %cst_9 : f32 to vector<8x64xf32>
    %11 = arith.maximumf %9, %10 : vector<8x64xf32>
    %c0_10 = arith.constant 0 : index
    %c0_11 = arith.constant 0 : index
    %12 = vector.load %arg3[%c0_10, %c0_11] : memref<64x64xf32, #tpu.memory_space<vmem>>, vector<64x64xf32>
    %cst_12 = arith.constant dense<0.000000e+00> : vector<8x64xf32>
    %13 = tpu.matmul %11, %12, %cst_12 {dimension_numbers = #tpu.dot_dimension_numbers<[1], [0], [0], [1], [0, 0, 1, 1], [], []>} : vector<8x64xf32>, vector<64x64xf32>, vector<8x64xf32> -> vector<8x64xf32>
    %14 = vector.broadcast %2 : vector<1x64xf32> to vector<8x64xf32>
    %15 = arith.addf %13, %14 : vector<8x64xf32>
    %cst_13 = arith.constant 0.000000e+00 : f32
    %16 = vector.broadcast %cst_13 : f32 to vector<8x64xf32>
    %17 = arith.maximumf %15, %16 : vector<8x64xf32>
    %c0_14 = arith.constant 0 : index
    %c0_15 = arith.constant 0 : index
    %18 = vector.load %arg4[%c0_14, %c0_15] : memref<64x32xf32, #tpu.memory_space<vmem>>, vector<64x32xf32>
    %cst_16 = arith.constant dense<0.000000e+00> : vector<8x32xf32>
    %19 = tpu.matmul %17, %18, %cst_16 {dimension_numbers = #tpu.dot_dimension_numbers<[1], [0], [0], [1], [0, 0, 1, 1], [], []>} : vector<8x64xf32>, vector<64x32xf32>, vector<8x32xf32> -> vector<8x32xf32>
    %20 = vector.broadcast %3 : vector<1x32xf32> to vector<8x32xf32>
    %21 = arith.addf %19, %20 : vector<8x32xf32>
    %cst_17 = arith.constant 0.000000e+00 : f32
    %22 = vector.broadcast %cst_17 : f32 to vector<8x32xf32>
    %23 = arith.maximumf %21, %22 : vector<8x32xf32>
    %24 = vector.broadcast %5 : vector<1x32xf32> to vector<8x32xf32>
    %25 = arith.mulf %23, %24 : vector<8x32xf32>
    %cst_18 = arith.constant dense<0.000000e+00> : vector<8xf32>
    %26 = vector.multi_reduction <add>, %25, %cst_18 [1] : vector<8x32xf32> to vector<8xf32>
    %27 = vector.shape_cast %26 : vector<8xf32> to vector<8x1xf32>
    %28 = vector.broadcast %4 : vector<1x1xf32> to vector<8x1xf32>
    %29 = arith.addf %27, %28 : vector<8x1xf32>
    %c0_19 = arith.constant 0 : index
    %c0_20 = arith.constant 0 : index
    %30 = vector.load %arg6[%c0_19, %c0_20] : memref<8x1xf32, #tpu.memory_space<vmem>>, vector<8x1xf32>
    tpu.vector_store %arg6[%c0_19, %c0_20], %29 {strides = array<i32>} : memref<8x1xf32, #tpu.memory_space<vmem>>, vector<8x1xf32>,
    return
  }
  func.func @transform_0(%arg0: i32) -> (i32, i32) {
    %c0_i32 = arith.constant 0 : i32
    %c0_i32_0 = arith.constant 0 : i32
    return %arg0, %c0_i32 : i32, i32
  }
  func.func @transform_1(%arg0: i32) -> (i32, i32) {
    %c0_i32 = arith.constant 0 : i32
    %c0_i32_0 = arith.constant 0 : i32
    %c0_i32_1 = arith.constant 0 : i32
    return %c0_i32, %c0_i32_0 : i32, i32
  }
  func.func @transform_2(%arg0: i32) -> (i32, i32) {
    %c0_i32 = arith.constant 0 : i32
    %c0_i32_0 = arith.constant 0 : i32
    %c0_i32_1 = arith.constant 0 : i32
    return %c0_i32, %c0_i32_0 : i32, i32
  }
  func.func @transform_3(%arg0: i32) -> (i32, i32) {
    %c0_i32 = arith.constant 0 : i32
    %c0_i32_0 = arith.constant 0 : i32
    %c0_i32_1 = arith.constant 0 : i32
    return %c0_i32, %c0_i32_0 : i32, i32
  }
  func.func @transform_4(%arg0: i32) -> (i32, i32) {
    %c0_i32 = arith.constant 0 : i32
    %c0_i32_0 = arith.constant 0 : i32
    %c0_i32_1 = arith.constant 0 : i32
    return %c0_i32, %c0_i32_0 : i32, i32
  }
  func.func @transform_5(%arg0: i32) -> (i32, i32) {
    %c0_i32 = arith.constant 0 : i32
    %c0_i32_0 = arith.constant 0 : i32
    return %arg0, %c0_i32 : i32, i32
  }
}

</mosaic_0001>

<llo_original>
// kernel: tpu_custom_call.1
$region0: #{tpu_custom_call.1}
  #allocation0 [shape = 'u32[]', space=smem, size = 0x4, offset = 0x4, fixed_abs, tag = 'smem constant byte address 0x4 - core index']
  #allocation1 [shape = 'u32[144,128]{1,0:T(1,128)}', space=vmem, size = 0x12000, scoped, tag = 'internal scratch']
  %s0 = inlined_call_operand.vmem [shape: f32[8,16], index: 0, kind: input, shape index: {}]
  %s1 = inlined_call_operand.vmem [shape: f32[16,64], index: 1, kind: input, shape index: {}]
  %s2 = inlined_call_operand.vmem [shape: f32[64,64], index: 2, kind: input, shape index: {}]
  %s3 = inlined_call_operand.vmem [shape: f32[64,32], index: 3, kind: input, shape index: {}]
  %s4 = inlined_call_operand.vmem [shape: f32[8,64], index: 4, kind: input, shape index: {}]
  %s5 = inlined_call_operand.vmem [shape: f32[8,1], index: 5, kind: output, shape index: {}]
  %s6 = sld [smem:[#allocation0]]
  $region30: #{tpu_custom_call.1} parent=0
    _
  %s8 = ssub.s32 1, %s6
  %s9 = scalar_select 0, %s8, %s6
  // Predicated region
  $region2: #{tpu_custom_call.1} parent=0 // pred_check
    _
  $region3: #{tpu_custom_call.1} parent=0 // pred_check_branch
    %11 = sbr.rel (0) target = $region5
  $region4: #{tpu_custom_call.1} parent=0 // pred_region
    _
  $region5: #{tpu_custom_call.1} parent=0 // pred_fallthru
    _
  // Predicated region
  $region6: #{tpu_custom_call.1} parent=0 // pred_check
    _
  $region7: #{tpu_custom_call.1} parent=0 // pred_check_branch
    %13 = sbr.rel (0) target = $region9
  $region8: #{tpu_custom_call.1} parent=0 // pred_region
    _
  $region9: #{tpu_custom_call.1} parent=0 // pred_fallthru
    _
  // Predicated region
  $region10: #{tpu_custom_call.1} parent=0 // pred_check
    _
  $region11: #{tpu_custom_call.1} parent=0 // pred_check_branch
    %15 = sbr.rel (0) target = $region13
  $region12: #{tpu_custom_call.1} parent=0 // pred_region
    _
  $region13: #{tpu_custom_call.1} parent=0 // pred_fallthru
    _
  // Predicated region
  $region14: #{tpu_custom_call.1} parent=0 // pred_check
    _
  $region15: #{tpu_custom_call.1} parent=0 // pred_check_branch
    %17 = sbr.rel (0) target = $region17
  $region16: #{tpu_custom_call.1} parent=0 // pred_region
    _
  $region17: #{tpu_custom_call.1} parent=0 // pred_fallthru
    _
  // Predicated region
  $region18: #{tpu_custom_call.1} parent=0 // pred_check
    _
  $region19: #{tpu_custom_call.1} parent=0 // pred_check_branch
    %19 = sbr.rel (0) target = $region21
  $region20: #{tpu_custom_call.1} parent=0 // pred_region
    _
  $region21: #{tpu_custom_call.1} parent=0 // pred_fallthru
    _
  %v20 = vld [vmem:[%s0] sm:$0xff]
  %v21 = vld [vmem:[%s4] sm:$0x1]
  %v22 = vld [vmem:[%s4 + $0x1] sm:$0x1]
  %v23 = vld [vmem:[%s4 + $0x2] sm:$0x1]
  %v24 = vld [vmem:[%s4 + $0x3] sm:$0x1]
  %v25 = vld [vmem:[%s4 + $0x4] sm:$0x1]
  %v26 = vld [vmem:[%s1] sm:$0xff]
  %v27 = vld [vmem:[%s1 + $0x8] sm:$0xff]
  %v28 = vlaneseq
  %v29 = vshrl.u32 %v28, 7
  %v30 = vsub.s32 0, %v29
  %v31 = vrot.slane %v21, %v30
  %vm32 = vcmask 130048
  %v34 = vsel %vm32, %v20, 0
  %36 = vmatprep.subr.mxu0 0.0
  %37 = vmatpush1.msra.mxu0 %v26
  %38 = vmatprep.subr.mxu0 0.0
  %39 = vmatpush1.msra.mxu0 %v27
  %40 = vmatprep.subr.mxu0 0.0
  %41 = vmatpush1.msra.mxu0 0.0
  %42 = vmatprep.subr.mxu0 0.0
  %43 = vmatpush1.msra.mxu0 0.0
  %44 = vmatprep.subr.mxu0 0.0
  %45 = vmatpush1.msra.mxu0 0.0
  %46 = vmatprep.subr.mxu0 0.0
  %47 = vmatpush1.msra.mxu0 0.0
  %48 = vmatprep.subr.mxu0 0.0
  %49 = vmatpush1.msra.mxu0 0.0
  %50 = vmatprep.subr.mxu0 0.0
  %51 = vmatpush1.msra.mxu0 0.0
  %52 = vmatprep.subr.mxu0 0.0
  %53 = vmatpush1.msra.mxu0 0.0
  %54 = vmatprep.subr.mxu0 0.0
  %55 = vmatpush1.msra.mxu0 0.0
  %56 = vmatprep.subr.mxu0 0.0
  %57 = vmatpush1.msra.mxu0 0.0
  %58 = vmatprep.subr.mxu0 0.0
  %59 = vmatpush1.msra.mxu0 0.0
  %60 = vmatprep.subr.mxu0 0.0
  %61 = vmatpush1.msra.mxu0 0.0
  %62 = vmatprep.subr.mxu0 0.0
  %63 = vmatpush1.msra.mxu0 0.0
  %64 = vmatprep.subr.mxu0 0.0
  %65 = vmatpush1.msra.mxu0 0.0
  %66 = vmatprep.subr.mxu0 0.0
  %67 = vmatpush1.msra.mxu0 0.0
  %68 = vmatprep.subr.mxu0 0.0
  %69 = vmatpush1.msra.mxu0 0.0
  %70 = vmatprep.subr.mxu0 0.0
  %71 = vmatpush1.msra.mxu0 0.0
  %72 = vmatprep.subr.mxu0 0.0
  %73 = vmatpush1.msra.mxu0 0.0
  %74 = vmatprep.subr.mxu0 0.0
  %75 = vmatpush1.msra.mxu0 0.0
  %76 = vmatprep.subr.mxu0 0.0
  %77 = vmatpush1.msra.mxu0 0.0
  %78 = vmatprep.subr.mxu0 0.0
  %79 = vmatpush1.msra.mxu0 0.0
  %80 = vmatprep.subr.mxu0 0.0
  %81 = vmatpush1.msra.mxu0 0.0
  %82 = vmatprep.subr.mxu0 0.0
  %83 = vmatpush1.msra.mxu0 0.0
  %84 = vmatprep.subr.mxu0 0.0
  %85 = vmatpush1.msra.mxu0 0.0
  %86 = vmatprep.subr.mxu0 0.0
  %87 = vmatpush1.msra.mxu0 0.0
  %88 = vmatprep.subr.mxu0 0.0
  %89 = vmatpush1.msra.mxu0 0.0
  %90 = vmatprep.subr.mxu0 0.0
  %91 = vmatpush1.msra.mxu0 0.0
  %92 = vmatprep.subr.mxu0 0.0
  %93 = vmatpush1.msra.mxu0 0.0
  %94 = vmatprep.subr.mxu0 0.0
  %95 = vmatpush1.msra.mxu0 0.0
  %96 = vmatprep.subr.mxu0 0.0
  %97 = vmatpush1.msra.mxu0 0.0
  %98 = vmatprep.subr.mxu0 0.0
  %99 = vmatpush1.msra.mxu0 0.0
  %100 = vmatprep.mubr.f32.mxu0 0.0
  %101 = vmatmul.mubr.f32.gmra.mrb[0].mxu0 %v34
  %v102 = vpop.f32.mrb[0].mxu0
  %v103 = vadd.f32 %v31, %v102
  %v104 = vpop.f32.mrb[0].mxu0
  %105 = vdwg.mxu0
  %v106 = vmax.f32 %v103, 0.0
  %v107 = vld [vmem:[%s2] sm:$0xff]
  %v108 = vld [vmem:[%s2 + $0x8] sm:$0xff]
  %v109 = vld [vmem:[%s2 + $0x10] sm:$0xff]
  %v110 = vld [vmem:[%s2 + $0x18] sm:$0xff]
  %v111 = vld [vmem:[%s2 + $0x20] sm:$0xff]
  %v112 = vld [vmem:[%s2 + $0x28] sm:$0xff]
  %v113 = vld [vmem:[%s2 + $0x30] sm:$0xff]
  %v114 = vld [vmem:[%s2 + $0x38] sm:$0xff]
  %v115 = vlaneseq
  %v116 = vshrl.u32 %v115, 7
  %v117 = vsub.s32 0, %v116
  %v118 = vrot.slane %v22, %v117
  %vm119 = vcmask 523264
  %v121 = vsel %vm119, %v106, 0
  %123 = vmatprep.subr.mxu0 0.0
  %124 = vmatpush1.msra.mxu0 %v107
  %125 = vmatprep.subr.mxu0 0.0
  %126 = vmatpush1.msra.mxu0 %v108
  %127 = vmatprep.subr.mxu0 0.0
  %128 = vmatpush1.msra.mxu0 %v109
  %129 = vmatprep.subr.mxu0 0.0
  %130 = vmatpush1.msra.mxu0 %v110
  %131 = vmatprep.subr.mxu0 0.0
  %132 = vmatpush1.msra.mxu0 %v111
  %133 = vmatprep.subr.mxu0 0.0
  %134 = vmatpush1.msra.mxu0 %v112
  %135 = vmatprep.subr.mxu0 0.0
  %136 = vmatpush1.msra.mxu0 %v113
  %137 = vmatprep.subr.mxu0 0.0
  %138 = vmatpush1.msra.mxu0 %v114
  %139 = vmatprep.subr.mxu0 0.0
  %140 = vmatpush1.msra.mxu0 0.0
  %141 = vmatprep.subr.mxu0 0.0
  %142 = vmatpush1.msra.mxu0 0.0
  %143 = vmatprep.subr.mxu0 0.0
  %144 = vmatpush1.msra.mxu0 0.0
  %145 = vmatprep.subr.mxu0 0.0
  %146 = vmatpush1.msra.mxu0 0.0
  %147 = vmatprep.subr.mxu0 0.0
  %148 = vmatpush1.msra.mxu0 0.0
  %149 = vmatprep.subr.mxu0 0.0
  %150 = vmatpush1.msra.mxu0 0.0
  %151 = vmatprep.subr.mxu0 0.0
  %152 = vmatpush1.msra.mxu0 0.0
  %153 = vmatprep.subr.mxu0 0.0
  %154 = vmatpush1.msra.mxu0 0.0
  %155 = vmatprep.subr.mxu0 0.0
  %156 = vmatpush1.msra.mxu0 0.0
  %157 = vmatprep.subr.mxu0 0.0
  %158 = vmatpush1.msra.mxu0 0.0
  %159 = vmatprep.subr.mxu0 0.0
  %160 = vmatpush1.msra.mxu0 0.0
  %161 = vmatprep.subr.mxu0 0.0
  %162 = vmatpush1.msra.mxu0 0.0
  %163 = vmatprep.subr.mxu0 0.0
  %164 = vmatpush1.msra.mxu0 0.0
  %165 = vmatprep.subr.mxu0 0.0
  %166 = vmatpush1.msra.mxu0 0.0
  %167 = vmatprep.subr.mxu0 0.0
  %168 = vmatpush1.msra.mxu0 0.0
  %169 = vmatprep.subr.mxu0 0.0
  %170 = vmatpush1.msra.mxu0 0.0
  %171 = vmatprep.subr.mxu0 0.0
  %172 = vmatpush1.msra.mxu0 0.0
  %173 = vmatprep.subr.mxu0 0.0
  %174 = vmatpush1.msra.mxu0 0.0
  %175 = vmatprep.subr.mxu0 0.0
  %176 = vmatpush1.msra.mxu0 0.0
  %177 = vmatprep.subr.mxu0 0.0
  %178 = vmatpush1.msra.mxu0 0.0
  %179 = vmatprep.subr.mxu0 0.0
  %180 = vmatpush1.msra.mxu0 0.0
  %181 = vmatprep.subr.mxu0 0.0
  %182 = vmatpush1.msra.mxu0 0.0
  %183 = vmatprep.subr.mxu0 0.0
  %184 = vmatpush1.msra.mxu0 0.0
  %185 = vmatprep.subr.mxu0 0.0
  %186 = vmatpush1.msra.mxu0 0.0
  %187 = vmatprep.mubr.f32.mxu0 0.0
  %188 = vmatmul.mubr.f32.gmra.mrb[0].mxu0 %v121
  %v189 = vpop.f32.mrb[0].mxu0
  %v190 = vadd.f32 %v118, %v189
  %v191 = vpop.f32.mrb[0].mxu0
  %192 = vdwg.mxu0
  %v193 = vmax.f32 %v190, 0.0
  %v194 = vld [vmem:[%s3] sm:$0xff]
  %v195 = vld [vmem:[%s3 + $0x8] sm:$0xff]
  %v196 = vld [vmem:[%s3 + $0x10] sm:$0xff]
  %v197 = vld [vmem:[%s3 + $0x18] sm:$0xff]
  %v198 = vld [vmem:[%s3 + $0x20] sm:$0xff]
  %v199 = vld [vmem:[%s3 + $0x28] sm:$0xff]
  %v200 = vld [vmem:[%s3 + $0x30] sm:$0xff]
  %v201 = vld [vmem:[%s3 + $0x38] sm:$0xff]
  %v202 = vlaneseq
  %v203 = vshrl.u32 %v202, 7
  %v204 = vsub.s32 0, %v203
  %v205 = vrot.slane %v23, %v204
  %v207 = vsel %vm119, %v193, 0
  %209 = vmatprep.subr.mxu0 0.0
  %210 = vmatpush1.msra.mxu0 %v194
  %211 = vmatprep.subr.mxu0 0.0
  %212 = vmatpush1.msra.mxu0 %v195
  %213 = vmatprep.subr.mxu0 0.0
  %214 = vmatpush1.msra.mxu0 %v196
  %215 = vmatprep.subr.mxu0 0.0
  %216 = vmatpush1.msra.mxu0 %v197
  %217 = vmatprep.subr.mxu0 0.0
  %218 = vmatpush1.msra.mxu0 %v198
  %219 = vmatprep.subr.mxu0 0.0
  %220 = vmatpush1.msra.mxu0 %v199
  %221 = vmatprep.subr.mxu0 0.0
  %222 = vmatpush1.msra.mxu0 %v200
  %223 = vmatprep.subr.mxu0 0.0
  %224 = vmatpush1.msra.mxu0 %v201
  %225 = vmatprep.subr.mxu0 0.0
  %226 = vmatpush1.msra.mxu0 0.0
  %227 = vmatprep.subr.mxu0 0.0
  %228 = vmatpush1.msra.mxu0 0.0
  %229 = vmatprep.subr.mxu0 0.0
  %230 = vmatpush1.msra.mxu0 0.0
  %231 = vmatprep.subr.mxu0 0.0
  %232 = vmatpush1.msra.mxu0 0.0
  %233 = vmatprep.subr.mxu0 0.0
  %234 = vmatpush1.msra.mxu0 0.0
  %235 = vmatprep.subr.mxu0 0.0
  %236 = vmatpush1.msra.mxu0 0.0
  %237 = vmatprep.subr.mxu0 0.0
  %238 = vmatpush1.msra.mxu0 0.0
  %239 = vmatprep.subr.mxu0 0.0
  %240 = vmatpush1.msra.mxu0 0.0
  %241 = vmatprep.subr.mxu0 0.0
  %242 = vmatpush1.msra.mxu0 0.0
  %243 = vmatprep.subr.mxu0 0.0
  %244 = vmatpush1.msra.mxu0 0.0
  %245 = vmatprep.subr.mxu0 0.0
  %246 = vmatpush1.msra.mxu0 0.0
  %247 = vmatprep.subr.mxu0 0.0
  %248 = vmatpush1.msra.mxu0 0.0
  %249 = vmatprep.subr.mxu0 0.0
  %250 = vmatpush1.msra.mxu0 0.0
  %251 = vmatprep.subr.mxu0 0.0
  %252 = vmatpush1.msra.mxu0 0.0
  %253 = vmatprep.subr.mxu0 0.0
  %254 = vmatpush1.msra.mxu0 0.0
  %255 = vmatprep.subr.mxu0 0.0
  %256 = vmatpush1.msra.mxu0 0.0
  %257 = vmatprep.subr.mxu0 0.0
  %258 = vmatpush1.msra.mxu0 0.0
  %259 = vmatprep.subr.mxu0 0.0
  %260 = vmatpush1.msra.mxu0 0.0
  %261 = vmatprep.subr.mxu0 0.0
  %262 = vmatpush1.msra.mxu0 0.0
  %263 = vmatprep.subr.mxu0 0.0
  %264 = vmatpush1.msra.mxu0 0.0
  %265 = vmatprep.subr.mxu0 0.0
  %266 = vmatpush1.msra.mxu0 0.0
  %267 = vmatprep.subr.mxu0 0.0
  %268 = vmatpush1.msra.mxu0 0.0
  %269 = vmatprep.subr.mxu0 0.0
  %270 = vmatpush1.msra.mxu0 0.0
  %271 = vmatprep.subr.mxu0 0.0
  %272 = vmatpush1.msra.mxu0 0.0
  %273 = vmatprep.mubr.f32.mxu0 0.0
  %274 = vmatmul.mubr.f32.gmra.mrb[0].mxu0 %v207
  %v275 = vpop.f32.mrb[0].mxu0
  %v276 = vadd.f32 %v205, %v275
  %v277 = vpop.f32.mrb[0].mxu0
  %278 = vdwg.mxu0
  %v279 = vmax.f32 %v276, 0.0
  %v280 = vlaneseq
  %v281 = vshrl.u32 %v280, 7
  %v282 = vsub.s32 0, %v281
  %v283 = vrot.slane %v25, %v282
  %v284 = vmul.f32 %v279, %v283
  %vm285 = vcmask 261120
  %v286 = vsel %vm285, %v284, 0.0
  %287 = vadd.xlane.f32.xlu0 %v286
  %v288 = vpop.xlane.xlu0 %287
  %v289 = vlaneseq
  %v290 = vshrl.u32 %v289, 7
  %v291 = vsub.s32 0, %v290
  %v292 = vrot.slane %v24, %v291
  %v293 = vadd.f32 %v288, %v292
  %vm294 = vcmask 7168
  %295 = vst.msk [vmem:[%s5] sm:$0xff] %vm294, %v293
  // Predicated region
  $region22: #{tpu_custom_call.1} parent=0 // pred_check
    _
  $region23: #{tpu_custom_call.1} parent=0 // pred_check_branch
    %297 = sbr.rel (0) target = $region25
  $region24: #{tpu_custom_call.1} parent=0 // pred_region
    _
  $region25: #{tpu_custom_call.1} parent=0 // pred_fallthru
    _
  // Predicated region
  $region26: #{tpu_custom_call.1} parent=0 // pred_check
    _
  $region27: #{tpu_custom_call.1} parent=0 // pred_check_branch
    %299 = sbr.rel (0) target = $region29
  $region28: #{tpu_custom_call.1} parent=0 // pred_region
    _
  $region29: #{tpu_custom_call.1} parent=0 // pred_fallthru
    _

</llo_original>
